<compile_context>
chip_gen: v7x
topology: tpu7x:2x2x1
jax: 0.10.0
libtpu: 0.0.40
codegen_flags: <defaults>
</compile_context>

<pallas_src>
import jax
import jax.numpy as jnp
from jax import lax
from jax.experimental import pallas as pl
from jax.experimental.pallas import tpu as pltpu

BOARD_SIZE = 8                          # settings.BOARD_SIZE (synthetic, small)
H = W = BOARD_SIZE
LAYER = BOARD_SIZE * BOARD_SIZE         # 64
C1_IN, C1_OUT = 2, 4
C2_IN, C2_OUT = 4, 4
FC1_IN, FC1_OUT = 4 * LAYER, 2 * LAYER  # 256 -> 128
FC2_IN, FC2_OUT = 2 * LAYER, LAYER      # 128 -> 64
ONEHOT = 2 * LAYER                      # 128 (folded-prefix input dim)


def _round_up(x, m):
    return ((x + m - 1) // m) * m


# ---------------------------------------------------------------------------
# Fused kernel: one-hot encode + folded-prefix GEMM + ReLU + fc2 GEMM.
# The folded prefix weight is split into the (obs==0) half and the (obs==1)
# half so no lane-dim concat is needed; both dots hit the MXU with f32 acc.
# ---------------------------------------------------------------------------
def fused_kernel(obs_ref, wp0_ref, wp1_ref, bp_ref, w2_ref, b2_ref, out_ref):
    x = obs_ref[...]                                   # (BB, 64)
    o0 = (x == 0.0).astype(jnp.float32)                # (obs == 0) channel
    o1 = (x == 1.0).astype(jnp.float32)                # (obs == 1) channel

    # fc1 pre-activation via folded conv1+conv2+flatten+fc1 affine map
    h = (jnp.dot(o0, wp0_ref[...], preferred_element_type=jnp.float32)
         + jnp.dot(o1, wp1_ref[...], preferred_element_type=jnp.float32)
         + bp_ref[...])
    h = jnp.maximum(h, 0.0)                            # ReLU

    out_ref[...] = (jnp.dot(h, w2_ref[...], preferred_element_type=jnp.float32)
                    + b2_ref[...])


def dqn_forward(obs, params, state=None, *, max_block_b=512):
    B = obs.shape[0]
    obs_flat = obs.reshape(B, LAYER).astype(jnp.float32)

    # Batch blocking: block rows must be a multiple of 8 (sublane) unless the
    # block equals the full (padded) batch.  Pad, run, slice back.
    BB = min(max_block_b, _round_up(B, 8))
    Bp = _round_up(B, BB)
    if Bp != B:
        obs_flat = jnp.pad(obs_flat, ((0, Bp - B), (0, 0)))
    grid = (Bp // BB,)

    out = pl.pallas_call(
        fused_kernel,
        out_shape=jax.ShapeDtypeStruct((Bp, FC2_OUT), jnp.float32),
        grid=grid,
        in_specs=[
            pl.BlockSpec((BB, LAYER), lambda b: (b, 0)),            # obs rows
            pl.BlockSpec((LAYER, FC1_OUT), lambda b: (0, 0)),       # folded W (==0 half)
            pl.BlockSpec((LAYER, FC1_OUT), lambda b: (0, 0)),       # folded W (==1 half)
            pl.BlockSpec((1, FC1_OUT), lambda b: (0, 0)),           # folded bias
            pl.BlockSpec((FC1_OUT, FC2_OUT), lambda b: (0, 0)),     # fc2 weight^T
            pl.BlockSpec((1, FC2_OUT), lambda b: (0, 0)),           # fc2 bias
        ],
        out_specs=pl.BlockSpec((BB, FC2_OUT), lambda b: (b, 0)),
        compiler_params=pltpu.CompilerParams(
            dimension_semantics=("parallel",)),                     # v7x: split batch across TCs
    )(obs_flat, params["wp0"], params["wp1"], params["bp"],
      params["fc2_w_t"], params["fc2_b"])

    return out[:B], state


# ---------------------------------------------------------------------------
# Parameter construction: raw (torch-layout) weights + folded prefix.
# ---------------------------------------------------------------------------
def _fold_prefix(w1, b1, w2, b2, fc1_w_t, fc1_b):
    """Fold one-hot->conv1->conv2->flatten->fc1 into W (128x128) + b (128)."""
    hi = jax.lax.Precision.HIGHEST
    dn = ("NCHW", "OIHW", "NCHW")
    # 128 basis one-hot inputs (channel-major flatten order) + the zero input.
    basis = jnp.eye(ONEHOT, dtype=jnp.float32).reshape(ONEHOT, C1_IN, H, W)
    xs = jnp.concatenate(
        [basis, jnp.zeros((1, C1_IN, H, W), jnp.float32)], axis=0)   # (129,2,8,8)
    y = lax.conv_general_dilated(xs, w1, (1, 1), [(1, 1), (1, 1)],
                                 dimension_numbers=dn, precision=hi)
    y = y + b1[None, :, None, None]
    y = lax.conv_general_dilated(y, w2, (1, 1), [(1, 1), (1, 1)],
                                 dimension_numbers=dn, precision=hi)
    y = y + b2[None, :, None, None]
    f = y.reshape(ONEHOT + 1, FC1_IN)                                # channel-major flatten
    h = jnp.dot(f, fc1_w_t, precision=hi) + fc1_b                    # (129, 128)
    b_fold = h[-1]                                                   # prefix(0)
    w_fold = h[:-1] - b_fold[None, :]                                # rows = input index
    return w_fold, b_fold.reshape(1, FC1_OUT)


def make_params():
    keys = jax.random.split(jax.random.PRNGKey(0), 8)
    scale = 0.1
    w1 = jax.random.normal(keys[0], (C1_OUT, C1_IN, 3, 3), jnp.float32) * scale
    b1 = jax.random.normal(keys[1], (C1_OUT,), jnp.float32) * scale
    w2 = jax.random.normal(keys[2], (C2_OUT, C2_IN, 3, 3), jnp.float32) * scale
    b2 = jax.random.normal(keys[3], (C2_OUT,), jnp.float32) * scale
    fc1_w_t = jax.random.normal(keys[4], (FC1_IN, FC1_OUT), jnp.float32) * scale
    fc1_b = jax.random.normal(keys[5], (FC1_OUT,), jnp.float32) * scale
    fc2_w_t = jax.random.normal(keys[6], (FC2_IN, FC2_OUT), jnp.float32) * scale
    fc2_b = jax.random.normal(keys[7], (FC2_OUT,), jnp.float32) * scale

    w_fold, b_fold = _fold_prefix(w1, b1, w2, b2, fc1_w_t, fc1_b)

    return {
        # raw params (for the reference path)
        "w1": w1, "b1": b1, "w2": w2, "b2": b2,
        "fc1_w_t": fc1_w_t, "fc1_b": fc1_b.reshape(1, FC1_OUT),
        "fc2_w_t": fc2_w_t, "fc2_b": fc2_b.reshape(1, FC2_OUT),
        # folded-prefix params (for the kernel); split by one-hot channel
        "wp0": w_fold[:LAYER],          # (64, 128) — (obs == 0) half
        "wp1": w_fold[LAYER:],          # (64, 128) — (obs == 1) half
        "bp": b_fold,                   # (1, 128)
    }


# ---------------------------------------------------------------------------
# Pure-JAX reference (explicit conv path) for verification.
# ---------------------------------------------------------------------------
def reference_forward(obs, params):
    hi = jax.lax.Precision.HIGHEST
    dn = ("NCHW", "OIHW", "NCHW")
    o0 = (obs == 0.0).astype(jnp.float32)[:, None]
    o1 = (obs == 1.0).astype(jnp.float32)[:, None]
    x = jnp.concatenate([o0, o1], axis=1)                      # (B, 2, H, W)
    y = lax.conv_general_dilated(x, params["w1"], (1, 1), [(1, 1), (1, 1)],
                                 dimension_numbers=dn, precision=hi)
    y = y + params["b1"][None, :, None, None]
    y = lax.conv_general_dilated(y, params["w2"], (1, 1), [(1, 1), (1, 1)],
                                 dimension_numbers=dn, precision=hi)
    y = y + params["b2"][None, :, None, None]
    f = y.reshape(obs.shape[0], -1)
    h = jnp.maximum(jnp.dot(f, params["fc1_w_t"], precision=hi) + params["fc1_b"], 0.0)
    return jnp.dot(h, params["fc2_w_t"], precision=hi) + params["fc2_b"]


if __name__ == "__main__":
    B = 2
    params = make_params()
    # obs: board cells in {0, 1, 2} (e.g. empty / player-0 / player-1)
    obs = jax.random.randint(jax.random.PRNGKey(0), (B, H, W), 0, 3).astype(jnp.float32)

    value, state = dqn_forward(obs, params, state=None)
    value = jax.block_until_ready(value)

    ref = reference_forward(obs, params)
    assert value.shape == (B, LAYER), value.shape
    assert state is None
    assert bool(jnp.all(jnp.isfinite(value)))
    assert bool(jnp.allclose(value, ref, rtol=1e-2, atol=1e-2)), (
        float(jnp.max(jnp.abs(value - ref))))
    print("KERNEL_OK")
</pallas_src>

<mosaic_0001>
module attributes {stable_mosaic.version = 11 : i64} {
  func.func @fused_kernel(%arg0: i32, %arg1: memref<8x64xf32, #tpu.memory_space<vmem>>, %arg2: memref<64x128xf32, #tpu.memory_space<vmem>>, %arg3: memref<64x128xf32, #tpu.memory_space<vmem>>, %arg4: memref<1x128xf32, #tpu.memory_space<vmem>>, %arg5: memref<128x64xf32, #tpu.memory_space<vmem>>, %arg6: memref<1x64xf32, #tpu.memory_space<vmem>>, %arg7: memref<8x64xf32, #tpu.memory_space<vmem>>) attributes {dimension_semantics = [#tpu.dimension_semantics<parallel>], iteration_bounds = array<i64: 1>, scalar_prefetch = 0 : i64, scratch_operands = 0 : i64, tpu.core_type = #tpu.core_type<tc>, window_params = [{transform_indices = @transform_0, window_bounds = array<i64: 8, 64>}, {pipeline_mode = #tpu.pipeline_mode<synchronous>, transform_indices = @transform_1, window_bounds = array<i64: 64, 128>}, {pipeline_mode = #tpu.pipeline_mode<synchronous>, transform_indices = @transform_2, window_bounds = array<i64: 64, 128>}, {pipeline_mode = #tpu.pipeline_mode<synchronous>, transform_indices = @transform_3, window_bounds = array<i64: 1, 128>}, {pipeline_mode = #tpu.pipeline_mode<synchronous>, transform_indices = @transform_4, window_bounds = array<i64: 128, 64>}, {pipeline_mode = #tpu.pipeline_mode<synchronous>, transform_indices = @transform_5, window_bounds = array<i64: 1, 64>}, {transform_indices = @transform_6, window_bounds = array<i64: 8, 64>}]} {
    %c0 = arith.constant 0 : index
    %c0_0 = arith.constant 0 : index
    %0 = vector.load %arg1[%c0, %c0_0] : memref<8x64xf32, #tpu.memory_space<vmem>>, vector<8x64xf32>
    %cst = arith.constant 0.000000e+00 : f32
    %1 = vector.broadcast %cst : f32 to vector<8x64xf32>
    %2 = arith.cmpf oeq, %0, %1 : vector<8x64xf32>
    %3 = arith.extui %2 : vector<8x64xi1> to vector<8x64xi32>
    %4 = arith.sitofp %3 : vector<8x64xi32> to vector<8x64xf32>
    %cst_1 = arith.constant 1.000000e+00 : f32
    %5 = vector.broadcast %cst_1 : f32 to vector<8x64xf32>
    %6 = arith.cmpf oeq, %0, %5 : vector<8x64xf32>
    %7 = arith.extui %6 : vector<8x64xi1> to vector<8x64xi32>
    %8 = arith.sitofp %7 : vector<8x64xi32> to vector<8x64xf32>
    %c0_2 = arith.constant 0 : index
    %c0_3 = arith.constant 0 : index
    %9 = vector.load %arg2[%c0_2, %c0_3] : memref<64x128xf32, #tpu.memory_space<vmem>>, vector<64x128xf32>
    %cst_4 = arith.constant dense<0.000000e+00> : vector<8x128xf32>
    %10 = tpu.matmul %4, %9, %cst_4 {dimension_numbers = #tpu.dot_dimension_numbers<[1], [0], [0], [1], [0, 0, 1, 1], [], []>} : vector<8x64xf32>, vector<64x128xf32>, vector<8x128xf32> -> vector<8x128xf32>
    %c0_5 = arith.constant 0 : index
    %c0_6 = arith.constant 0 : index
    %11 = vector.load %arg3[%c0_5, %c0_6] : memref<64x128xf32, #tpu.memory_space<vmem>>, vector<64x128xf32>
    %cst_7 = arith.constant dense<0.000000e+00> : vector<8x128xf32>
    %12 = tpu.matmul %8, %11, %cst_7 {dimension_numbers = #tpu.dot_dimension_numbers<[1], [0], [0], [1], [0, 0, 1, 1], [], []>} : vector<8x64xf32>, vector<64x128xf32>, vector<8x128xf32> -> vector<8x128xf32>
    %13 = arith.addf %10, %12 : vector<8x128xf32>
    %c0_8 = arith.constant 0 : index
    %c0_9 = arith.constant 0 : index
    %14 = vector.load %arg4[%c0_8, %c0_9] : memref<1x128xf32, #tpu.memory_space<vmem>>, vector<1x128xf32>
    %15 = vector.broadcast %14 : vector<1x128xf32> to vector<8x128xf32>
    %16 = arith.addf %13, %15 : vector<8x128xf32>
    %cst_10 = arith.constant 0.000000e+00 : f32
    %17 = vector.broadcast %cst_10 : f32 to vector<8x128xf32>
    %18 = arith.maximumf %16, %17 : vector<8x128xf32>
    %c0_11 = arith.constant 0 : index
    %c0_12 = arith.constant 0 : index
    %19 = vector.load %arg5[%c0_11, %c0_12] : memref<128x64xf32, #tpu.memory_space<vmem>>, vector<128x64xf32>
    %cst_13 = arith.constant dense<0.000000e+00> : vector<8x64xf32>
    %20 = tpu.matmul %18, %19, %cst_13 {dimension_numbers = #tpu.dot_dimension_numbers<[1], [0], [0], [1], [0, 0, 1, 1], [], []>} : vector<8x128xf32>, vector<128x64xf32>, vector<8x64xf32> -> vector<8x64xf32>
    %c0_14 = arith.constant 0 : index
    %c0_15 = arith.constant 0 : index
    %21 = vector.load %arg6[%c0_14, %c0_15] : memref<1x64xf32, #tpu.memory_space<vmem>>, vector<1x64xf32>
    %22 = vector.broadcast %21 : vector<1x64xf32> to vector<8x64xf32>
    %23 = arith.addf %20, %22 : vector<8x64xf32>
    %c0_16 = arith.constant 0 : index
    %c0_17 = arith.constant 0 : index
    %24 = vector.load %arg7[%c0_16, %c0_17] : memref<8x64xf32, #tpu.memory_space<vmem>>, vector<8x64xf32>
    tpu.vector_store %arg7[%c0_16, %c0_17], %23 {strides = array<i32>} : memref<8x64xf32, #tpu.memory_space<vmem>>, vector<8x64xf32>,
    return
  }
  func.func @transform_0(%arg0: i32) -> (i32, i32) {
    %c0_i32 = arith.constant 0 : i32
    %c0_i32_0 = arith.constant 0 : i32
    return %arg0, %c0_i32 : i32, i32
  }
  func.func @transform_1(%arg0: i32) -> (i32, i32) {
    %c0_i32 = arith.constant 0 : i32
    %c0_i32_0 = arith.constant 0 : i32
    %c0_i32_1 = arith.constant 0 : i32
    return %c0_i32, %c0_i32_0 : i32, i32
  }
  func.func @transform_2(%arg0: i32) -> (i32, i32) {
    %c0_i32 = arith.constant 0 : i32
    %c0_i32_0 = arith.constant 0 : i32
    %c0_i32_1 = arith.constant 0 : i32
    return %c0_i32, %c0_i32_0 : i32, i32
  }
  func.func @transform_3(%arg0: i32) -> (i32, i32) {
    %c0_i32 = arith.constant 0 : i32
    %c0_i32_0 = arith.constant 0 : i32
    %c0_i32_1 = arith.constant 0 : i32
    return %c0_i32, %c0_i32_0 : i32, i32
  }
  func.func @transform_4(%arg0: i32) -> (i32, i32) {
    %c0_i32 = arith.constant 0 : i32
    %c0_i32_0 = arith.constant 0 : i32
    %c0_i32_1 = arith.constant 0 : i32
    return %c0_i32, %c0_i32_0 : i32, i32
  }
  func.func @transform_5(%arg0: i32) -> (i32, i32) {
    %c0_i32 = arith.constant 0 : i32
    %c0_i32_0 = arith.constant 0 : i32
    %c0_i32_1 = arith.constant 0 : i32
    return %c0_i32, %c0_i32_0 : i32, i32
  }
  func.func @transform_6(%arg0: i32) -> (i32, i32) {
    %c0_i32 = arith.constant 0 : i32
    %c0_i32_0 = arith.constant 0 : i32
    return %arg0, %c0_i32 : i32, i32
  }
}

</mosaic_0001>

<llo_original>
// kernel: tpu_custom_call.1
$region0: #{tpu_custom_call.1}
  #allocation0 [shape = 'u32[]', space=smem, size = 0x4, offset = 0x4, fixed_abs, tag = 'smem constant byte address 0x4 - core index']
  #allocation1 [shape = 'u32[144,128]{1,0:T(1,128)}', space=vmem, size = 0x12000, scoped, tag = 'internal scratch']
  %s0 = inlined_call_operand.vmem [shape: f32[8,64], index: 0, kind: input, shape index: {}]
  %s1 = inlined_call_operand.vmem [shape: f32[64,128], index: 1, kind: input, shape index: {}]
  %s2 = inlined_call_operand.vmem [shape: f32[64,128], index: 2, kind: input, shape index: {}]
  %s3 = inlined_call_operand.vmem [shape: f32[1,128], index: 3, kind: input, shape index: {}]
  %s4 = inlined_call_operand.vmem [shape: f32[128,64], index: 4, kind: input, shape index: {}]
  %s5 = inlined_call_operand.vmem [shape: f32[1,64], index: 5, kind: input, shape index: {}]
  %s6 = inlined_call_operand.hbm [shape: f32[8,64], index: 6, kind: output, shape index: {}]
  %s7 = sld [smem:[#allocation0]]
  $region34: #{tpu_custom_call.1} parent=0
    _
  %s9 = ssub.s32 1, %s7
  %s10 = scalar_select 0, %s9, %s7
  $region1: #{tpu_custom_call.1} parent=0
    #allocation2 [shape = 'u8[4096]{0}', space=vmem, size = 0x1000, scoped, tag = 'output window, operand 0, single buffered']
    #allocation3 [shape = 's32[1]{0}', space=sflag, size = 0x4, scoped, tag = 'scoped memory for tpu_custom_call.1']
    %11 = vsyncpa [#allocation3], 0
    // Predicated region
    $region2: #{tpu_custom_call.1} parent=1 // pred_check
      _
    $region3: #{tpu_custom_call.1} parent=1 // pred_check_branch
      %13 = sbr.rel (0) target = $region5
    $region4: #{tpu_custom_call.1} parent=1 // pred_region
      _
    $region5: #{tpu_custom_call.1} parent=1 // pred_fallthru
      _
    // Predicated region
    $region6: #{tpu_custom_call.1} parent=1 // pred_check
      _
    $region7: #{tpu_custom_call.1} parent=1 // pred_check_branch
      %15 = sbr.rel (0) target = $region9
    $region8: #{tpu_custom_call.1} parent=1 // pred_region
      _
    $region9: #{tpu_custom_call.1} parent=1 // pred_fallthru
      _
    // Predicated region
    $region10: #{tpu_custom_call.1} parent=1 // pred_check
      _
    $region11: #{tpu_custom_call.1} parent=1 // pred_check_branch
      %17 = sbr.rel (0) target = $region13
    $region12: #{tpu_custom_call.1} parent=1 // pred_region
      _
    $region13: #{tpu_custom_call.1} parent=1 // pred_fallthru
      _
    // Predicated region
    $region14: #{tpu_custom_call.1} parent=1 // pred_check
      _
    $region15: #{tpu_custom_call.1} parent=1 // pred_check_branch
      %19 = sbr.rel (0) target = $region17
    $region16: #{tpu_custom_call.1} parent=1 // pred_region
      _
    $region17: #{tpu_custom_call.1} parent=1 // pred_fallthru
      _
    // Predicated region
    $region18: #{tpu_custom_call.1} parent=1 // pred_check
      _
    $region19: #{tpu_custom_call.1} parent=1 // pred_check_branch
      %21 = sbr.rel (0) target = $region21
    $region20: #{tpu_custom_call.1} parent=1 // pred_region
      _
    $region21: #{tpu_custom_call.1} parent=1 // pred_fallthru
      _
    // Predicated region
    $region22: #{tpu_custom_call.1} parent=1 // pred_check
      _
    $region23: #{tpu_custom_call.1} parent=1 // pred_check_branch
      %23 = sbr.rel (0) target = $region25
    $region24: #{tpu_custom_call.1} parent=1 // pred_region
      _
    $region25: #{tpu_custom_call.1} parent=1 // pred_fallthru
      _
    %v24 = vld [vmem:[%s0] sm:$0xff]
    %vm25 = vcmp.eq.f32.partialorder %v24, 0.0
    %v26 = vsel %vm25, 1, 0
    %v27 = vcvt.s32.f32 %v26
    %vm28 = vcmp.eq.f32.partialorder %v24, 1.0
    %v29 = vsel %vm28, 1, 0
    %v30 = vcvt.s32.f32 %v29
    %v31 = vld [vmem:[%s1] sm:$0xff]
    %v32 = vld [vmem:[%s1 + $0x8] sm:$0xff]
    %v33 = vld [vmem:[%s1 + $0x10] sm:$0xff]
    %v34 = vld [vmem:[%s1 + $0x18] sm:$0xff]
    %v35 = vld [vmem:[%s1 + $0x20] sm:$0xff]
    %v36 = vld [vmem:[%s1 + $0x28] sm:$0xff]
    %v37 = vld [vmem:[%s1 + $0x30] sm:$0xff]
    %v38 = vld [vmem:[%s1 + $0x38] sm:$0xff]
    %v39 = vld [vmem:[%s2] sm:$0xff]
    %v40 = vld [vmem:[%s2 + $0x8] sm:$0xff]
    %v41 = vld [vmem:[%s2 + $0x10] sm:$0xff]
    %v42 = vld [vmem:[%s2 + $0x18] sm:$0xff]
    %v43 = vld [vmem:[%s2 + $0x20] sm:$0xff]
    %v44 = vld [vmem:[%s2 + $0x28] sm:$0xff]
    %v45 = vld [vmem:[%s2 + $0x30] sm:$0xff]
    %v46 = vld [vmem:[%s2 + $0x38] sm:$0xff]
    %vm47 = vcmask 523264
    %v49 = vsel %vm47, %v30, 0
    %51 = vmatprep.subr.mxu0 0.0
    %52 = vmatpush1.msra.mxu0 %v39
    %53 = vmatprep.subr.mxu0 0.0
    %54 = vmatpush1.msra.mxu0 %v40
    %55 = vmatprep.subr.mxu0 0.0
    %56 = vmatpush1.msra.mxu0 %v41
    %57 = vmatprep.subr.mxu0 0.0
    %58 = vmatpush1.msra.mxu0 %v42
    %59 = vmatprep.subr.mxu0 0.0
    %60 = vmatpush1.msra.mxu0 %v43
    %61 = vmatprep.subr.mxu0 0.0
    %62 = vmatpush1.msra.mxu0 %v44
    %63 = vmatprep.subr.mxu0 0.0
    %64 = vmatpush1.msra.mxu0 %v45
    %65 = vmatprep.subr.mxu0 0.0
    %66 = vmatpush1.msra.mxu0 %v46
    %67 = vmatprep.subr.mxu0 0.0
    %68 = vmatpush1.msra.mxu0 0.0
    %69 = vmatprep.subr.mxu0 0.0
    %70 = vmatpush1.msra.mxu0 0.0
    %71 = vmatprep.subr.mxu0 0.0
    %72 = vmatpush1.msra.mxu0 0.0
    %73 = vmatprep.subr.mxu0 0.0
    %74 = vmatpush1.msra.mxu0 0.0
    %75 = vmatprep.subr.mxu0 0.0
    %76 = vmatpush1.msra.mxu0 0.0
    %77 = vmatprep.subr.mxu0 0.0
    %78 = vmatpush1.msra.mxu0 0.0
    %79 = vmatprep.subr.mxu0 0.0
    %80 = vmatpush1.msra.mxu0 0.0
    %81 = vmatprep.subr.mxu0 0.0
    %82 = vmatpush1.msra.mxu0 0.0
    %83 = vmatprep.subr.mxu0 0.0
    %84 = vmatpush1.msra.mxu0 0.0
    %85 = vmatprep.subr.mxu0 0.0
    %86 = vmatpush1.msra.mxu0 0.0
    %87 = vmatprep.subr.mxu0 0.0
    %88 = vmatpush1.msra.mxu0 0.0
    %89 = vmatprep.subr.mxu0 0.0
    %90 = vmatpush1.msra.mxu0 0.0
    %91 = vmatprep.subr.mxu0 0.0
    %92 = vmatpush1.msra.mxu0 0.0
    %93 = vmatprep.subr.mxu0 0.0
    %94 = vmatpush1.msra.mxu0 0.0
    %95 = vmatprep.subr.mxu0 0.0
    %96 = vmatpush1.msra.mxu0 0.0
    %97 = vmatprep.subr.mxu0 0.0
    %98 = vmatpush1.msra.mxu0 0.0
    %99 = vmatprep.subr.mxu0 0.0
    %100 = vmatpush1.msra.mxu0 0.0
    %101 = vmatprep.subr.mxu0 0.0
    %102 = vmatpush1.msra.mxu0 0.0
    %103 = vmatprep.subr.mxu0 0.0
    %104 = vmatpush1.msra.mxu0 0.0
    %105 = vmatprep.subr.mxu0 0.0
    %106 = vmatpush1.msra.mxu0 0.0
    %107 = vmatprep.subr.mxu0 0.0
    %108 = vmatpush1.msra.mxu0 0.0
    %109 = vmatprep.subr.mxu0 0.0
    %110 = vmatpush1.msra.mxu0 0.0
    %111 = vmatprep.subr.mxu0 0.0
    %112 = vmatpush1.msra.mxu0 0.0
    %113 = vmatprep.subr.mxu0 0.0
    %114 = vmatpush1.msra.mxu0 0.0
    %115 = vmatprep.mubr.f32.mxu0 0.0
    %116 = vmatmul.mubr.f32.gmra.mrb[0].mxu0 %v49
    %v117 = vpop.f32.mrb[0].mxu0
    %v118 = vadd.f32 0.0, %v117
    %v119 = vpop.f32.mrb[0].mxu0
    %120 = vdwg.mxu0
    %v122 = vsel %vm47, %v27, 0
    %124 = vmatprep.subr.mxu0 0.0
    %125 = vmatpush1.msra.mxu0 %v31
    %126 = vmatprep.subr.mxu0 0.0
    %127 = vmatpush1.msra.mxu0 %v32
    %128 = vmatprep.subr.mxu0 0.0
    %129 = vmatpush1.msra.mxu0 %v33
    %130 = vmatprep.subr.mxu0 0.0
    %131 = vmatpush1.msra.mxu0 %v34
    %132 = vmatprep.subr.mxu0 0.0
    %133 = vmatpush1.msra.mxu0 %v35
    %134 = vmatprep.subr.mxu0 0.0
    %135 = vmatpush1.msra.mxu0 %v36
    %136 = vmatprep.subr.mxu0 0.0
    %137 = vmatpush1.msra.mxu0 %v37
    %138 = vmatprep.subr.mxu0 0.0
    %139 = vmatpush1.msra.mxu0 %v38
    %140 = vmatprep.subr.mxu0 0.0
    %141 = vmatpush1.msra.mxu0 0.0
    %142 = vmatprep.subr.mxu0 0.0
    %143 = vmatpush1.msra.mxu0 0.0
    %144 = vmatprep.subr.mxu0 0.0
    %145 = vmatpush1.msra.mxu0 0.0
    %146 = vmatprep.subr.mxu0 0.0
    %147 = vmatpush1.msra.mxu0 0.0
    %148 = vmatprep.subr.mxu0 0.0
    %149 = vmatpush1.msra.mxu0 0.0
    %150 = vmatprep.subr.mxu0 0.0
    %151 = vmatpush1.msra.mxu0 0.0
    %152 = vmatprep.subr.mxu0 0.0
    %153 = vmatpush1.msra.mxu0 0.0
    %154 = vmatprep.subr.mxu0 0.0
    %155 = vmatpush1.msra.mxu0 0.0
    %156 = vmatprep.subr.mxu0 0.0
    %157 = vmatpush1.msra.mxu0 0.0
    %158 = vmatprep.subr.mxu0 0.0
    %159 = vmatpush1.msra.mxu0 0.0
    %160 = vmatprep.subr.mxu0 0.0
    %161 = vmatpush1.msra.mxu0 0.0
    %162 = vmatprep.subr.mxu0 0.0
    %163 = vmatpush1.msra.mxu0 0.0
    %164 = vmatprep.subr.mxu0 0.0
    %165 = vmatpush1.msra.mxu0 0.0
    %166 = vmatprep.subr.mxu0 0.0
    %167 = vmatpush1.msra.mxu0 0.0
    %168 = vmatprep.subr.mxu0 0.0
    %169 = vmatpush1.msra.mxu0 0.0
    %170 = vmatprep.subr.mxu0 0.0
    %171 = vmatpush1.msra.mxu0 0.0
    %172 = vmatprep.subr.mxu0 0.0
    %173 = vmatpush1.msra.mxu0 0.0
    %174 = vmatprep.subr.mxu0 0.0
    %175 = vmatpush1.msra.mxu0 0.0
    %176 = vmatprep.subr.mxu0 0.0
    %177 = vmatpush1.msra.mxu0 0.0
    %178 = vmatprep.subr.mxu0 0.0
    %179 = vmatpush1.msra.mxu0 0.0
    %180 = vmatprep.subr.mxu0 0.0
    %181 = vmatpush1.msra.mxu0 0.0
    %182 = vmatprep.subr.mxu0 0.0
    %183 = vmatpush1.msra.mxu0 0.0
    %184 = vmatprep.subr.mxu0 0.0
    %185 = vmatpush1.msra.mxu0 0.0
    %186 = vmatprep.subr.mxu0 0.0
    %187 = vmatpush1.msra.mxu0 0.0
    %188 = vmatprep.mubr.f32.mxu0 0.0
    %189 = vmatmul.mubr.f32.gmra.mrb[0].mxu0 %v122
    %v190 = vpop.f32.mrb[0].mxu0
    %v191 = vadd.f32 %v118, %v190
    %v192 = vpop.f32.mrb[0].mxu0
    %193 = vdwg.mxu0
    %v194 = vld [vmem:[%s3] sm:$0x1]
    %v196 = vlaneseq
    %v197 = vshrl.u32 %v196, 7
    %v198 = vsub.s32 0, %v197
    %v199 = vrot.slane %v194, %v198
    %v201 = vadd.f32 %v191, %v199
    %v202 = vmax.f32 %v201, 0.0
    %v203 = vld [vmem:[%s4] sm:$0xff]
    %v204 = vld [vmem:[%s4 + $0x8] sm:$0xff]
    %v205 = vld [vmem:[%s4 + $0x10] sm:$0xff]
    %v206 = vld [vmem:[%s4 + $0x18] sm:$0xff]
    %v207 = vld [vmem:[%s4 + $0x20] sm:$0xff]
    %v208 = vld [vmem:[%s4 + $0x28] sm:$0xff]
    %v209 = vld [vmem:[%s4 + $0x30] sm:$0xff]
    %v210 = vld [vmem:[%s4 + $0x38] sm:$0xff]
    %v211 = vld [vmem:[%s4 + $0x40] sm:$0xff]
    %v212 = vld [vmem:[%s4 + $0x48] sm:$0xff]
    %v213 = vld [vmem:[%s4 + $0x50] sm:$0xff]
    %v214 = vld [vmem:[%s4 + $0x58] sm:$0xff]
    %v215 = vld [vmem:[%s4 + $0x60] sm:$0xff]
    %v216 = vld [vmem:[%s4 + $0x68] sm:$0xff]
    %v217 = vld [vmem:[%s4 + $0x70] sm:$0xff]
    %v218 = vld [vmem:[%s4 + $0x78] sm:$0xff]
    %v219 = vld [vmem:[%s5] sm:$0x1]
    %v221 = vlaneseq
    %v222 = vshrl.u32 %v221, 7
    %v223 = vsub.s32 0, %v222
    %v224 = vrot.slane %v219, %v223
    %226 = vmatprep.subr.mxu0 0.0
    %227 = vmatpush1.msra.mxu0 %v203
    %228 = vmatprep.subr.mxu0 0.0
    %229 = vmatpush1.msra.mxu0 %v204
    %230 = vmatprep.subr.mxu0 0.0
    %231 = vmatpush1.msra.mxu0 %v205
    %232 = vmatprep.subr.mxu0 0.0
    %233 = vmatpush1.msra.mxu0 %v206
    %234 = vmatprep.subr.mxu0 0.0
    %235 = vmatpush1.msra.mxu0 %v207
    %236 = vmatprep.subr.mxu0 0.0
    %237 = vmatpush1.msra.mxu0 %v208
    %238 = vmatprep.subr.mxu0 0.0
    %239 = vmatpush1.msra.mxu0 %v209
    %240 = vmatprep.subr.mxu0 0.0
    %241 = vmatpush1.msra.mxu0 %v210
    %242 = vmatprep.subr.mxu0 0.0
    %243 = vmatpush1.msra.mxu0 %v211
    %244 = vmatprep.subr.mxu0 0.0
    %245 = vmatpush1.msra.mxu0 %v212
    %246 = vmatprep.subr.mxu0 0.0
    %247 = vmatpush1.msra.mxu0 %v213
    %248 = vmatprep.subr.mxu0 0.0
    %249 = vmatpush1.msra.mxu0 %v214
    %250 = vmatprep.subr.mxu0 0.0
    %251 = vmatpush1.msra.mxu0 %v215
    %252 = vmatprep.subr.mxu0 0.0
    %253 = vmatpush1.msra.mxu0 %v216
    %254 = vmatprep.subr.mxu0 0.0
    %255 = vmatpush1.msra.mxu0 %v217
    %256 = vmatprep.subr.mxu0 0.0
    %257 = vmatpush1.msra.mxu0 %v218
    %258 = vmatprep.subr.mxu0 0.0
    %259 = vmatpush1.msra.mxu0 0.0
    %260 = vmatprep.subr.mxu0 0.0
    %261 = vmatpush1.msra.mxu0 0.0
    %262 = vmatprep.subr.mxu0 0.0
    %263 = vmatpush1.msra.mxu0 0.0
    %264 = vmatprep.subr.mxu0 0.0
    %265 = vmatpush1.msra.mxu0 0.0
    %266 = vmatprep.subr.mxu0 0.0
    %267 = vmatpush1.msra.mxu0 0.0
    %268 = vmatprep.subr.mxu0 0.0
    %269 = vmatpush1.msra.mxu0 0.0
    %270 = vmatprep.subr.mxu0 0.0
    %271 = vmatpush1.msra.mxu0 0.0
    %272 = vmatprep.subr.mxu0 0.0
    %273 = vmatpush1.msra.mxu0 0.0
    %274 = vmatprep.subr.mxu0 0.0
    %275 = vmatpush1.msra.mxu0 0.0
    %276 = vmatprep.subr.mxu0 0.0
    %277 = vmatpush1.msra.mxu0 0.0
    %278 = vmatprep.subr.mxu0 0.0
    %279 = vmatpush1.msra.mxu0 0.0
    %280 = vmatprep.subr.mxu0 0.0
    %281 = vmatpush1.msra.mxu0 0.0
    %282 = vmatprep.subr.mxu0 0.0
    %283 = vmatpush1.msra.mxu0 0.0
    %284 = vmatprep.subr.mxu0 0.0
    %285 = vmatpush1.msra.mxu0 0.0
    %286 = vmatprep.subr.mxu0 0.0
    %287 = vmatpush1.msra.mxu0 0.0
    %288 = vmatprep.subr.mxu0 0.0
    %289 = vmatpush1.msra.mxu0 0.0
    %290 = vmatprep.mubr.f32.mxu0 0.0
    %291 = vmatmul.mubr.f32.gmra.mrb[0].mxu0 %v202
    %v292 = vpop.f32.mrb[0].mxu0
    %v293 = vadd.f32 %v224, %v292
    %v294 = vpop.f32.mrb[0].mxu0
    %295 = vdwg.mxu0
    %296 = vst.msk [vmem:[#allocation2] sm:$0xff] %vm47, %v293
    // Predicated region
    $region26: #{tpu_custom_call.1} parent=1 // pred_check
      _
    $region27: #{tpu_custom_call.1} parent=1 // pred_check_branch
      %298 = sbr.rel (0) target = $region29
    $region28: #{tpu_custom_call.1} parent=1 // pred_region
      %s300 = ssub.s32 128, 128
      %301 = vsyncadd [#allocation3], %s300
      %s303 = sshll.u32 [#allocation2], 4
      %s304 = int_to_ptr.vmem [resolvable:$true] %s303
      %306 = dma.vmem_to_hbm [thread:$0]  %s304, 128, %s6, [#allocation3]
    $region29: #{tpu_custom_call.1} parent=1 // pred_fallthru
      _
    // Predicated region
    $region30: #{tpu_custom_call.1} parent=1 // pred_check
      _
    $region31: #{tpu_custom_call.1} parent=1 // pred_check_branch
      %308 = sbr.rel (0) target = $region33
    $region32: #{tpu_custom_call.1} parent=1 // pred_region
      %309 = dma.done [#allocation3], 128
    $region33: #{tpu_custom_call.1} parent=1 // pred_fallthru
      _
    %310 = vsyncpa [#allocation3], 1

</llo_original>
